<compile_context>
chip_gen: v6e
topology: v6e:2x2x1
jax: 0.10.0
libtpu: 0.0.40
codegen_flags: <defaults>
</compile_context>

<pallas_src>
import math
import jax
import jax.numpy as jnp
from jax.experimental import pallas as pl
from jax.experimental.pallas import tpu as pltpu


# ---------------- coefficient builders (mirror the PyTorch helpers) -----------
def all_one_coeffs(n):
    return jnp.ones((n,), dtype=jnp.float32)


def harmonic_coeffs(n, k=1):
    return jnp.array([1.0 * k / i for i in range(1, n + 1)], dtype=jnp.float32)


def linear_coeffs(n, k=1):
    return jnp.array([1.0 - i * 1.0 * k / n for i in range(n)], dtype=jnp.float32)


# ---------------- helpers -------------------------------------------------------
def _round_up(x, m):
    return ((x + m - 1) // m) * m


def _choose_tiles(batch, in_size, out_size):
    # tm multiple of 8, tn/tk multiples of 128 (lane-dense), capped so the
    # double-buffered tile footprint stays small on every TPU generation
    # (including v7x's 64 MiB VMEM).
    tm = min(256, _round_up(batch, 8))
    tn = min(512, _round_up(out_size, 128))
    tk = min(512, _round_up(in_size, 128))
    return tm, tn, tk


# ---------------- Pallas kernel ------------------------------------------------
def idp_linear_kernel(x_ref, w_ref, c_ref, sb_ref, o_ref, acc_ref):
    # x_ref:   (tm, tk)  f32  (cast to bf16 right before the MXU; x traffic is tiny)
    # w_ref:   (tk, tn)  bf16 pre-transposed weight panel
    # c_ref:   (1, tn)   f32  coeffs row for this output-column tile
    # sb_ref:  (1, 1)    f32  scalar bias = dot(coeffs, bias), in SMEM
    # o_ref:   (tm, tn)  f32
    # acc_ref: (tm, tn)  f32  VMEM scratch accumulator
    k = pl.program_id(2)

    @pl.when(k == 0)
    def _init():
        acc_ref[...] = jnp.zeros_like(acc_ref)

    acc_ref[...] += jnp.dot(
        x_ref[...].astype(jnp.bfloat16),
        w_ref[...],
        preferred_element_type=jnp.float32,
    )

    @pl.when(k == pl.num_programs(2) - 1)
    def _finalize():
        # f32 epilogue: scale output columns by coeffs, add scalar bias.
        o_ref[...] = (acc_ref[...] * c_ref[...] + sb_ref[0, 0]).astype(o_ref.dtype)


# ---------------- wrapper -------------------------------------------------------
def idp_linear_forward(x, weight, bias, coeffs):
    """x: (B, in); weight: (out, in); bias: (out,); coeffs: (out,). Returns (B, out) f32."""
    B, in_size = x.shape
    out_size = weight.shape[0]

    tm, tn, tk = _choose_tiles(B, in_size, out_size)
    Mp = _round_up(B, tm)
    Np = _round_up(out_size, tn)
    Kp = _round_up(in_size, tk)

    # One-time HBM-side prep (in a real model these would be done once at
    # parameter setup, not per forward): transpose weight to (in, out) so the
    # kernel contracts on the natural layout, cast to bf16 to halve weight
    # streaming traffic; zero-pad everything to tile multiples.
    w_t = jnp.pad(
        weight.T.astype(jnp.bfloat16),
        ((0, Kp - in_size), (0, Np - out_size)),
    )
    x_p = jnp.pad(x, ((0, Mp - B), (0, Kp - in_size)))  # keep native dtype
    c_row = jnp.pad(
        coeffs.reshape(1, out_size).astype(jnp.float32),
        ((0, 0), (0, Np - out_size)),
    )
    scalar_bias = jnp.dot(
        coeffs.astype(jnp.float32), bias.astype(jnp.float32)
    ).reshape(1, 1)

    grid = (Np // tn, Mp // tm, Kp // tk)  # out leading (shards weight panels)

    out_p = pl.pallas_call(
        idp_linear_kernel,
        out_shape=jax.ShapeDtypeStruct((Mp, Np), jnp.float32),
        grid=grid,
        in_specs=[
            pl.BlockSpec((tm, tk), lambda n, m, k: (m, k)),   # x tile
            pl.BlockSpec((tk, tn), lambda n, m, k: (k, n)),   # W^T tile
            pl.BlockSpec((1, tn), lambda n, m, k: (0, n)),    # coeffs row tile
            pl.BlockSpec(memory_space=pltpu.MemorySpace.SMEM),  # scalar bias
        ],
        out_specs=pl.BlockSpec((tm, tn), lambda n, m, k: (m, n)),
        scratch_shapes=[pltpu.VMEM((tm, tn), jnp.float32)],
        compiler_params=pltpu.CompilerParams(
            dimension_semantics=("parallel", "parallel", "arbitrary"),
        ),
    )(x_p, w_t, c_row, scalar_bias)

    return out_p[:B, :out_size]


# ---------------- parameter construction (deterministic, mirrors __init__) ------
def make_idp_linear_params(key, in_size, out_size, coeff_type="all-one",
                           active=None):
    # Xavier-uniform weight init (same distribution as nn.init.xavier_uniform_)
    bound = math.sqrt(6.0 / (in_size + out_size))
    weight = jax.random.uniform(
        key, (out_size, in_size), dtype=jnp.float32, minval=-bound, maxval=bound
    )
    bias = jnp.full((out_size,), 0.01, dtype=jnp.float32)

    if coeff_type == "all-one":
        coeffs = all_one_coeffs(out_size)
    elif coeff_type == "linear":
        coeffs = linear_coeffs(out_size)
    elif coeff_type == "harmonic":
        coeffs = harmonic_coeffs(out_size)
    else:
        raise ValueError(coeff_type)

    # forward(): zero out coefficients past `active`
    if active is None:
        active = out_size
    if active < out_size:
        mask = (jnp.arange(out_size) < active).astype(jnp.float32)
        coeffs = coeffs * mask

    return weight, bias, coeffs


# ---------------- reference (pure JAX f32) for verification ---------------------
def idp_linear_ref(x, weight, bias, coeffs):
    scaled_w = coeffs[:, None] * weight
    y = x @ scaled_w.T
    return y + jnp.dot(coeffs, bias)


if __name__ == "__main__":
    key = jax.random.PRNGKey(0)
    kx, kw, kx2, kw2 = jax.random.split(key, 4)

    # Case 1: small aligned-ish shapes (tiles become full padded dims)
    batch, in_size, out_size = 8, 32, 32
    x = jax.random.normal(kx, (batch, in_size), dtype=jnp.float32)
    weight, bias, coeffs = make_idp_linear_params(
        kw, in_size, out_size, coeff_type="harmonic"
    )
    out = jax.block_until_ready(idp_linear_forward(x, weight, bias, coeffs))
    ref = idp_linear_ref(x, weight, bias, coeffs)
    assert out.shape == (batch, out_size)
    # bf16 MXU operands with f32 accumulation -> compare to f32 reference
    # with a tolerance appropriate for bf16 inputs.
    assert jnp.allclose(out, ref, atol=3e-2, rtol=3e-2), "case1 mismatch"

    # Case 2: unaligned shapes + active < out_size (exercises padding path)
    batch2, in2, out2 = 5, 96, 200
    x2 = jax.random.normal(kx2, (batch2, in2), dtype=jnp.float32)
    weight2, bias2, coeffs2 = make_idp_linear_params(
        kw2, in2, out2, coeff_type="linear", active=150
    )
    out2_v = jax.block_until_ready(idp_linear_forward(x2, weight2, bias2, coeffs2))
    ref2 = idp_linear_ref(x2, weight2, bias2, coeffs2)
    assert out2_v.shape == (batch2, out2)
    assert jnp.allclose(out2_v, ref2, atol=3e-2, rtol=3e-2), "case2 mismatch"

    print("KERNEL_OK")
</pallas_src>

<mosaic_0001>
module attributes {stable_mosaic.version = 11 : i64} {
  func.func @idp_linear_kernel(%arg0: i32, %arg1: i32, %arg2: i32, %arg3: memref<8x128xf32, #tpu.memory_space<vmem>>, %arg4: memref<128x128xbf16, #tpu.memory_space<vmem>>, %arg5: memref<1x128xf32, #tpu.memory_space<vmem>>, %arg6: memref<1x1xf32, #tpu.memory_space<smem>>, %arg7: memref<8x128xf32, #tpu.memory_space<vmem>>, %arg8: memref<8x128xf32, #tpu.memory_space<vmem>>) attributes {dimension_semantics = [#tpu.dimension_semantics<parallel>, #tpu.dimension_semantics<parallel>, #tpu.dimension_semantics<arbitrary>], iteration_bounds = array<i64: 1, 1, 1>, scalar_prefetch = 0 : i64, scratch_operands = 1 : i64, tpu.core_type = #tpu.core_type<tc>, window_params = [{transform_indices = @transform_0, window_bounds = array<i64: 8, 128>}, {transform_indices = @transform_1, window_bounds = array<i64: 128, 128>}, {transform_indices = @transform_2, window_bounds = array<i64: 1, 128>}, {transform_indices = @transform_3, window_bounds = array<i64: 1, 1>}, {transform_indices = @transform_4, window_bounds = array<i64: 8, 128>}]} {
    %c0_i32 = arith.constant 0 : i32
    %0 = arith.cmpi eq, %arg2, %c0_i32 : i32
    %1 = arith.extui %0 : i1 to i32
    %c0_i32_0 = arith.constant 0 : i32
    %2 = arith.cmpi ne, %1, %c0_i32_0 : i32
    scf.if %2 {
      %cst_10 = arith.constant 0.000000e+00 : f32
      %13 = vector.broadcast %cst_10 : f32 to vector<8x128xf32>
      %c0_11 = arith.constant 0 : index
      %c0_12 = arith.constant 0 : index
      %14 = vector.load %arg8[%c0_11, %c0_12] : memref<8x128xf32, #tpu.memory_space<vmem>>, vector<8x128xf32>
      tpu.vector_store %arg8[%c0_11, %c0_12], %13 {strides = array<i32>} : memref<8x128xf32, #tpu.memory_space<vmem>>, vector<8x128xf32>,
    } else {
    }
    %c0 = arith.constant 0 : index
    %c0_1 = arith.constant 0 : index
    %3 = vector.load %arg8[%c0, %c0_1] : memref<8x128xf32, #tpu.memory_space<vmem>>, vector<8x128xf32>
    %c0_2 = arith.constant 0 : index
    %c0_3 = arith.constant 0 : index
    %4 = vector.load %arg3[%c0_2, %c0_3] : memref<8x128xf32, #tpu.memory_space<vmem>>, vector<8x128xf32>
    %5 = arith.truncf %4 : vector<8x128xf32> to vector<8x128xbf16>
    %c0_4 = arith.constant 0 : index
    %c0_5 = arith.constant 0 : index
    %6 = vector.load %arg4[%c0_4, %c0_5] : memref<128x128xbf16, #tpu.memory_space<vmem>>, vector<128x128xbf16>
    %cst = arith.constant dense<0.000000e+00> : vector<8x128xf32>
    %7 = tpu.matmul %5, %6, %cst {dimension_numbers = #tpu.dot_dimension_numbers<[1], [0], [0], [1], [0, 0, 1, 1], [], []>} : vector<8x128xbf16>, vector<128x128xbf16>, vector<8x128xf32> -> vector<8x128xf32>
    %8 = arith.addf %3, %7 : vector<8x128xf32>
    %c0_6 = arith.constant 0 : index
    %c0_7 = arith.constant 0 : index
    %9 = vector.load %arg8[%c0_6, %c0_7] : memref<8x128xf32, #tpu.memory_space<vmem>>, vector<8x128xf32>
    tpu.vector_store %arg8[%c0_6, %c0_7], %8 {strides = array<i32>} : memref<8x128xf32, #tpu.memory_space<vmem>>, vector<8x128xf32>,
    %c0_i32_8 = arith.constant 0 : i32
    %10 = arith.cmpi eq, %arg2, %c0_i32_8 : i32
    %11 = arith.extui %10 : i1 to i32
    %c0_i32_9 = arith.constant 0 : i32
    %12 = arith.cmpi ne, %11, %c0_i32_9 : i32
    scf.if %12 {
      %c0_10 = arith.constant 0 : index
      %c0_11 = arith.constant 0 : index
      %13 = vector.load %arg8[%c0_10, %c0_11] : memref<8x128xf32, #tpu.memory_space<vmem>>, vector<8x128xf32>
      %c0_12 = arith.constant 0 : index
      %c0_13 = arith.constant 0 : index
      %14 = vector.load %arg5[%c0_12, %c0_13] : memref<1x128xf32, #tpu.memory_space<vmem>>, vector<1x128xf32>
      %15 = vector.broadcast %14 : vector<1x128xf32> to vector<8x128xf32>
      %16 = arith.mulf %13, %15 : vector<8x128xf32>
      %c0_14 = arith.constant 0 : index
      %c0_15 = arith.constant 0 : index
      %17 = memref.load %arg6[%c0_14, %c0_15] : memref<1x1xf32, #tpu.memory_space<smem>>
      %18 = vector.broadcast %17 : f32 to vector<8x128xf32>
      %19 = arith.addf %16, %18 : vector<8x128xf32>
      %c0_16 = arith.constant 0 : index
      %c0_17 = arith.constant 0 : index
      %20 = vector.load %arg7[%c0_16, %c0_17] : memref<8x128xf32, #tpu.memory_space<vmem>>, vector<8x128xf32>
      tpu.vector_store %arg7[%c0_16, %c0_17], %19 {strides = array<i32>} : memref<8x128xf32, #tpu.memory_space<vmem>>, vector<8x128xf32>,
    } else {
    }
    return
  }
  func.func @transform_0(%arg0: i32, %arg1: i32, %arg2: i32) -> (i32, i32) {
    %c0_i32 = arith.constant 0 : i32
    return %arg1, %arg2 : i32, i32
  }
  func.func @transform_1(%arg0: i32, %arg1: i32, %arg2: i32) -> (i32, i32) {
    %c0_i32 = arith.constant 0 : i32
    return %arg2, %arg0 : i32, i32
  }
  func.func @transform_2(%arg0: i32, %arg1: i32, %arg2: i32) -> (i32, i32) {
    %c0_i32 = arith.constant 0 : i32
    %c0_i32_0 = arith.constant 0 : i32
    return %c0_i32, %arg0 : i32, i32
  }
  func.func @transform_3(%arg0: i32, %arg1: i32, %arg2: i32) -> (i32, i32) {
    %c0_i32 = arith.constant 0 : i32
    %c0_i32_0 = arith.constant 0 : i32
    %c0_i32_1 = arith.constant 0 : i32
    return %c0_i32, %c0_i32_0 : i32, i32
  }
  func.func @transform_4(%arg0: i32, %arg1: i32, %arg2: i32) -> (i32, i32) {
    %c0_i32 = arith.constant 0 : i32
    return %arg1, %arg0 : i32, i32
  }
}

</mosaic_0001>

<llo_original>
// kernel: tpu_custom_call.1
$region0: #{tpu_custom_call.1}
  #allocation0 [shape = 'u32[]', space=smem, size = 0x4, offset = 0x4, fixed_abs, tag = 'smem constant byte address 0x4 - core index']
  #allocation1 [shape = 'u32[144,128]{1,0:T(1,128)}', space=vmem, size = 0x12000, scoped, tag = 'internal scratch']
  #allocation2 [shape = 'f32[8,128]{1,0:T(8,128)}', space=vmem, size = 0x1000, scoped, tag = 'scratch operand']
  #allocation3 [shape = 'f32[1,1]{1,0:T(1,128)S(6)}', space=smem, size = 0x200, scoped, tag = 'scoped memory for tpu_custom_call.1']
  %s0 = inlined_call_operand.hbm [shape: f32[8,128], index: 0, kind: input, shape index: {}]
  %s1 = inlined_call_operand.hbm [shape: bf16[128,128], index: 1, kind: input, shape index: {}]
  %s2 = inlined_call_operand.vmem [shape: f32[1,128], index: 2, kind: input, shape index: {}]
  %s3 = inlined_call_operand.<no memory space> [shape: f32[1,1], index: 3, kind: input, shape index: {}]
  %s4 = inlined_call_operand.hbm [shape: f32[8,128], index: 4, kind: output, shape index: {}]
  %s5 = sld [smem:[#allocation0]]
  $region42: #{tpu_custom_call.1} parent=0
    _
  %s7 = ssub.s32 1, %s5
  %s8 = scalar_select 0, %s7, %s5
  %9 = sst [smem:[#allocation3]] %s3
  $region1: #{tpu_custom_call.1} parent=0
    #allocation4 [shape = 'u8[4096]{0}', space=vmem, size = 0x1000, scoped, tag = 'input window, operand 0, single buffered']
    #allocation5 [shape = 's32[1]{0}', space=sflag, size = 0x4, scoped, tag = 'scoped memory for tpu_custom_call.1']
    #allocation6 [shape = 's32[1]{0}', space=sflag, size = 0x4, scoped, tag = 'scoped memory for tpu_custom_call.1']
    #allocation7 [shape = 'u8[32768]{0}', space=vmem, size = 0x8000, scoped, tag = 'input window, operand 1, single buffered']
    #allocation8 [shape = 's32[1]{0}', space=sflag, size = 0x4, scoped, tag = 'scoped memory for tpu_custom_call.1']
    #allocation9 [shape = 'u8[4096]{0}', space=vmem, size = 0x1000, scoped, tag = 'output window, operand 0, single buffered']
    %10 = vsyncpa [#allocation5], 0
    %11 = vsyncpa [#allocation8], 0
    %12 = vsyncpa [#allocation6], 0
    // Predicated region
    $region2: #{tpu_custom_call.1} parent=1 // pred_check
      _
    $region3: #{tpu_custom_call.1} parent=1 // pred_check_branch
      %14 = sbr.rel (0) target = $region5
    $region4: #{tpu_custom_call.1} parent=1 // pred_region
      %s16 = ssub.s32 128, 128
      %17 = vsyncadd [#allocation5], %s16
      %s19 = sshll.u32 [#allocation4], 4
      %s20 = int_to_ptr.vmem [resolvable:$true] %s19
      %22 = dma.hbm_to_vmem [thread:$0]  %s0, 128, %s20, [#allocation5]
    $region5: #{tpu_custom_call.1} parent=1 // pred_fallthru
      _
    // Predicated region
    $region6: #{tpu_custom_call.1} parent=1 // pred_check
      _
    $region7: #{tpu_custom_call.1} parent=1 // pred_check_branch
      %24 = sbr.rel (0) target = $region9
    $region8: #{tpu_custom_call.1} parent=1 // pred_region
      %s26 = ssub.s32 1024, 1024
      %27 = vsyncadd [#allocation8], %s26
      %s28 = sshll.u32 [#allocation7], 4
      %s29 = int_to_ptr.vmem [resolvable:$true] %s28
      %34 = dma.hbm_to_vmem [thread:$0]  %s1, 1024, %s29, [#allocation8], 64, 64, 4
    $region9: #{tpu_custom_call.1} parent=1 // pred_fallthru
      _
    // Predicated region
    $region10: #{tpu_custom_call.1} parent=1 // pred_check
      _
    $region11: #{tpu_custom_call.1} parent=1 // pred_check_branch
      %36 = sbr.rel (0) target = $region13
    $region12: #{tpu_custom_call.1} parent=1 // pred_region
      _
    $region13: #{tpu_custom_call.1} parent=1 // pred_fallthru
      _
    // Predicated region
    $region14: #{tpu_custom_call.1} parent=1 // pred_check
      _
    $region15: #{tpu_custom_call.1} parent=1 // pred_check_branch
      %38 = sbr.rel (0) target = $region17
    $region16: #{tpu_custom_call.1} parent=1 // pred_region
      _
    $region17: #{tpu_custom_call.1} parent=1 // pred_fallthru
      _
    // Predicated region
    $region18: #{tpu_custom_call.1} parent=1 // pred_check
      _
    $region19: #{tpu_custom_call.1} parent=1 // pred_check_branch
      %40 = sbr.rel (0) target = $region21
    $region20: #{tpu_custom_call.1} parent=1 // pred_region
      %41 = dma.done [#allocation5], 128
    $region21: #{tpu_custom_call.1} parent=1 // pred_fallthru
      _
    // Predicated region
    $region22: #{tpu_custom_call.1} parent=1 // pred_check
      _
    $region23: #{tpu_custom_call.1} parent=1 // pred_check_branch
      %43 = sbr.rel (0) target = $region25
    $region24: #{tpu_custom_call.1} parent=1 // pred_region
      %44 = dma.done [#allocation8], 1024
    $region25: #{tpu_custom_call.1} parent=1 // pred_fallthru
      _
    %p46 = scmp.eq.s32.totalorder 0, 0
    // Predicated region
    $region26: #{tpu_custom_call.1} parent=1 // pred_check
      %p47 = pneg %p46
    $region27: #{tpu_custom_call.1} parent=1 // pred_check_branch
      %49 = sbr.rel (%p47) target = $region29
    $region28: #{tpu_custom_call.1} parent=1 // pred_region
      %50 = vst [vmem:[#allocation2] sm:$0xff] 0.0
    $region29: #{tpu_custom_call.1} parent=1 // pred_fallthru
      _
    %v51 = vld [vmem:[#allocation2] sm:$0xff]
    %v52 = vld [vmem:[#allocation4] sm:$0xff]
    %v53 = vpack.c.bf16 %v52, %v52
    %v54 = vld [vmem:[#allocation7] sm:$0xf]
    %v55 = vld [vmem:[#allocation7 + $0x4] sm:$0xf]
    %v56 = vld [vmem:[#allocation7 + $0x8] sm:$0xf]
    %v57 = vld [vmem:[#allocation7 + $0xc] sm:$0xf]
    %v58 = vld [vmem:[#allocation7 + $0x10] sm:$0xf]
    %v59 = vld [vmem:[#allocation7 + $0x14] sm:$0xf]
    %v60 = vld [vmem:[#allocation7 + $0x18] sm:$0xf]
    %v61 = vld [vmem:[#allocation7 + $0x1c] sm:$0xf]
    %v62 = vld [vmem:[#allocation7 + $0x20] sm:$0xf]
    %v63 = vld [vmem:[#allocation7 + $0x24] sm:$0xf]
    %v64 = vld [vmem:[#allocation7 + $0x28] sm:$0xf]
    %v65 = vld [vmem:[#allocation7 + $0x2c] sm:$0xf]
    %v66 = vld [vmem:[#allocation7 + $0x30] sm:$0xf]
    %v67 = vld [vmem:[#allocation7 + $0x34] sm:$0xf]
    %v68 = vld [vmem:[#allocation7 + $0x38] sm:$0xf]
    %v69 = vld [vmem:[#allocation7 + $0x3c] sm:$0xf]
    %v86 = vunpack.c.l.b16 %v54
    %v87 = vunpack.c.l.b16 %v55
    %v88 = vunpack.c.l.b16 %v56
    %v89 = vunpack.c.l.b16 %v57
    %v90 = vunpack.c.l.b16 %v58
    %v91 = vunpack.c.l.b16 %v59
    %v92 = vunpack.c.l.b16 %v60
    %v93 = vunpack.c.l.b16 %v61
    %v94 = vunpack.c.l.b16 %v62
    %v95 = vunpack.c.l.b16 %v63
    %v96 = vunpack.c.l.b16 %v64
    %v97 = vunpack.c.l.b16 %v65
    %v98 = vunpack.c.l.b16 %v66
    %v99 = vunpack.c.l.b16 %v67
    %v100 = vunpack.c.l.b16 %v68
    %v101 = vunpack.c.l.b16 %v69
    %v102 = vpack.c.b16 %v87, %v86
    %v103 = vpack.c.b16 %v89, %v88
    %v104 = vpack.c.b16 %v91, %v90
    %v105 = vpack.c.b16 %v93, %v92
    %v106 = vpack.c.b16 %v95, %v94
    %v107 = vpack.c.b16 %v97, %v96
    %v108 = vpack.c.b16 %v99, %v98
    %v109 = vpack.c.b16 %v101, %v100
    %118 = vmatprep.subr.bf16.mxu0 0
    %119 = vmatpush1.bf16.msra.mxu0 %v109
    %120 = vmatprep.subr.bf16.mxu0 0
    %121 = vmatpush1.bf16.msra.mxu0 %v108
    %122 = vmatprep.subr.bf16.mxu0 0
    %123 = vmatpush1.bf16.msra.mxu0 %v107
    %124 = vmatprep.subr.bf16.mxu0 0
    %125 = vmatpush1.bf16.msra.mxu0 %v106
    %126 = vmatprep.subr.bf16.mxu0 0
    %127 = vmatpush1.bf16.msra.mxu0 %v105
    %128 = vmatprep.subr.bf16.mxu0 0
    %129 = vmatpush1.bf16.msra.mxu0 %v104
    %130 = vmatprep.subr.bf16.mxu0 0
    %131 = vmatpush1.bf16.msra.mxu0 %v103
    %132 = vmatprep.subr.bf16.mxu0 0
    %133 = vmatpush1.bf16.msra.mxu0 %v102
    %134 = vmatprep.subr.bf16.mxu0 0
    %135 = vmatpush2.bf16.msra.mxu0 0
    %136 = vmatprep.subr.bf16.mxu0 0
    %137 = vmatpush2.bf16.msra.mxu0 0
    %138 = vmatprep.subr.bf16.mxu0 0
    %139 = vmatpush2.bf16.msra.mxu0 0
    %140 = vmatprep.subr.bf16.mxu0 0
    %141 = vmatpush2.bf16.msra.mxu0 0
    %142 = vmatprep.subr.bf16.mxu0 0
    %143 = vmatpush2.bf16.msra.mxu0 0
    %144 = vmatprep.subr.bf16.mxu0 0
    %145 = vmatpush2.bf16.msra.mxu0 0
    %146 = vmatprep.subr.bf16.mxu0 0
    %147 = vmatpush2.bf16.msra.mxu0 0
    %148 = vmatprep.subr.bf16.mxu0 0
    %149 = vmatpush2.bf16.msra.mxu0 0
    %150 = vmatprep.mubr.bf16.mxu0 0
    %151 = vmatmul.mubr.bf16.gmra.mxu0 %v53
    %v152 = vpop.f32.mrf.mxu0
    %v153 = vadd.f32 0.0, %v152
    %v154 = vpop.f32.mrf.mxu0
    %v155 = vpop.f32.mrf.mxu0
    %v156 = vpop.f32.mrf.mxu0
    %157 = vdwg.mxu0
    %v158 = vadd.f32 %v51, %v153
    %159 = vst [vmem:[#allocation2] sm:$0xff] %v158
    // Predicated region
    $region30: #{tpu_custom_call.1} parent=1 // pred_check
      %p160 = pneg %p46
    $region31: #{tpu_custom_call.1} parent=1 // pred_check_branch
      %162 = sbr.rel (%p160) target = $region33
    $region32: #{tpu_custom_call.1} parent=1 // pred_region
      %v163 = vld [vmem:[#allocation2] sm:$0xff]
      %v164 = vld [vmem:[%s2] sm:$0x1]
      %v166 = vlaneseq
      %v167 = vshrl.u32 %v166, 7
      %v168 = vsub.s32 0, %v167
      %v169 = vrot.slane %v164, %v168
      %v171 = vmul.f32 %v163, %v169
      %s172 = sld [smem:[#allocation3]]
      %v173 = vstv %s172
      %v174 = vadd.f32 %v171, %v173
      %175 = vst [vmem:[#allocation9] sm:$0xff] %v174
    $region33: #{tpu_custom_call.1} parent=1 // pred_fallthru
      _
    // Predicated region
    $region34: #{tpu_custom_call.1} parent=1 // pred_check
      _
    $region35: #{tpu_custom_call.1} parent=1 // pred_check_branch
      %177 = sbr.rel (0) target = $region37
    $region36: #{tpu_custom_call.1} parent=1 // pred_region
      %s179 = ssub.s32 128, 128
      %180 = vsyncadd [#allocation6], %s179
      %s182 = sshll.u32 [#allocation9], 4
      %s183 = int_to_ptr.vmem [resolvable:$true] %s182
      %185 = dma.vmem_to_hbm [thread:$0]  %s183, 128, %s4, [#allocation6]
    $region37: #{tpu_custom_call.1} parent=1 // pred_fallthru
      _
    // Predicated region
    $region38: #{tpu_custom_call.1} parent=1 // pred_check
      _
    $region39: #{tpu_custom_call.1} parent=1 // pred_check_branch
      %187 = sbr.rel (0) target = $region41
    $region40: #{tpu_custom_call.1} parent=1 // pred_region
      %188 = dma.done [#allocation6], 128
    $region41: #{tpu_custom_call.1} parent=1 // pred_fallthru
      _
    %189 = vsyncpa [#allocation5], 1
    %190 = vsyncpa [#allocation8], 1
    %191 = vsyncpa [#allocation6], 1

</llo_original>
